<compile_context>
chip_gen: v7x
topology: tpu7x:2x2x1
jax: 0.10.0
libtpu: 0.0.40
codegen_flags: <defaults>
</compile_context>

<pallas_src>
import math

import jax
import jax.numpy as jnp
from jax.experimental import pallas as pl
from jax.experimental.pallas import tpu as pltpu


def _round_up(x: int, m: int) -> int:
    return ((x + m - 1) // m) * m


# ----------------------------------------------------------------------------
# Kernels
# ----------------------------------------------------------------------------
def _logreg_kernel(x_ref, w_ref, b_ref, o_ref):
    # x_ref: (TM, F_pad), w_ref: (F_pad, C_pad), b_ref: (1, C_pad),
    # o_ref: (TM, C_pad).  Single MXU matmul with f32 accumulation + bias add.
    acc = jnp.dot(x_ref[...], w_ref[...], preferred_element_type=jnp.float32)
    o_ref[...] = (acc + b_ref[...]).astype(o_ref.dtype)


def _logreg_kernel_ktiled(x_ref, w_ref, b_ref, o_ref, acc_ref):
    # K (feature) reduction axis is the last grid axis; accumulate in f32 VMEM.
    k = pl.program_id(1)

    @pl.when(k == 0)
    def _():
        acc_ref[...] = jnp.zeros_like(acc_ref)

    acc_ref[...] += jnp.dot(
        x_ref[...], w_ref[...], preferred_element_type=jnp.float32
    )

    @pl.when(k == pl.num_programs(1) - 1)
    def _():
        o_ref[...] = (acc_ref[...] + b_ref[...]).astype(o_ref.dtype)


# ----------------------------------------------------------------------------
# Tiling policy
# ----------------------------------------------------------------------------
_VMEM_BUDGET = 32 * 2**20          # conservative across v5e / v6e / v7x
_SINGLE_BUFFER_MIN_BYTES = 1 << 20  # only single-buffer the weight when it matters


def _vmem_estimate(tm: int, tk: int, c_pad: int, grid_k: int, w_bufs: int) -> int:
    itemsize = 4
    x_bytes = 2 * tm * tk * itemsize            # double-buffered input tile
    o_bytes = 2 * tm * c_pad * itemsize         # double-buffered output tile
    w_bytes = w_bufs * tk * c_pad * itemsize    # weight block(s)
    b_bytes = 2 * 8 * c_pad * itemsize          # bias (sublane-padded), 2 bufs
    acc_bytes = tm * c_pad * itemsize if grid_k > 1 else 0
    return x_bytes + o_bytes + w_bytes + b_bytes + acc_bytes


def _pick_tm(B: int, tk: int, c_pad: int, grid_k: int, w_bufs: int):
    """Largest power-of-two batch tile with bounded over-padding and VMEM fit."""
    b_sub = _round_up(B, 8)
    tm = 8
    for cand in (2048, 1024, 512, 256, 128, 64, 32, 16, 8):
        if cand > b_sub:
            continue
        b_pad = _round_up(B, cand)
        # Cap batch over-padding at ~12.5% (never reject tiny batches).
        if b_pad - B > max(8, B // 8):
            continue
        if _vmem_estimate(cand, tk, c_pad, grid_k, w_bufs) > _VMEM_BUDGET:
            continue
        tm = cand
        break
    # Make sure the "parallel" batch axis has >= 2 tiles whenever there is
    # enough work, so both TensorCores get used on v7x (harmless elsewhere).
    while b_sub >= 16 and tm > 8 and _round_up(B, tm) // tm < 2:
        tm //= 2
    return tm, _round_up(B, tm)


# ----------------------------------------------------------------------------
# Forward
# ----------------------------------------------------------------------------
def logreg_forward(seq, weight, bias):
    """seq: (B, F) f32, weight: (C, F) f32 (PyTorch nn.Linear layout),
    bias: (C,) f32 -> (B, C) f32."""
    B, F = seq.shape
    C, F2 = weight.shape
    assert F == F2

    # Lane-dense padding targets (padding is mathematically exact for a
    # linear layer; padded rows/cols are sliced off / multiply by zero).
    F_pad = _round_up(F, 128)
    C_pad = _round_up(C, 128)

    # K-tiling only for very large feature dims; otherwise whole-F blocks.
    if F_pad > 4096:
        TK = 512
        F_pad = _round_up(F, TK)
    else:
        TK = F_pad
    grid_k = F_pad // TK

    # Resident (constant index_map) weight is single-buffered only when big
    # enough for the VMEM saving to matter.
    w_block_bytes = TK * C_pad * 4
    w_single = (grid_k == 1) and (w_block_bytes >= _SINGLE_BUFFER_MIN_BYTES)
    w_bufs = 1 if w_single else 2

    TM, B_pad = _pick_tm(B, TK, C_pad, grid_k, w_bufs)
    grid_m = B_pad // TM

    vmem_limit = int(_vmem_estimate(TM, TK, C_pad, grid_k, w_bufs) + 16 * 2**20)

    # --- Inputs: pad only when actually needed (skip extra HBM traffic) -----
    if B_pad != B or F_pad != F:
        x_p = jnp.zeros((B_pad, F_pad), dtype=seq.dtype).at[:B, :F].set(seq)
    else:
        x_p = seq

    w_t = weight.T  # (F, C): natural [K, N] layout for the MXU, no in-kernel .T
    if F_pad != F or C_pad != C:
        w_p = jnp.zeros((F_pad, C_pad), dtype=weight.dtype).at[:F, :C].set(w_t)
    else:
        w_p = w_t

    b_row = bias.reshape(1, C)
    if C_pad != C:
        b_p = jnp.zeros((1, C_pad), dtype=bias.dtype).at[:, :C].set(b_row)
    else:
        b_p = b_row

    if grid_k == 1:
        resident_mode = pl.Buffered(1) if w_single else None
        out_p = pl.pallas_call(
            _logreg_kernel,
            out_shape=jax.ShapeDtypeStruct((B_pad, C_pad), seq.dtype),
            grid_spec=pltpu.PrefetchScalarGridSpec(
                num_scalar_prefetch=0,
                grid=(grid_m,),
                in_specs=[
                    pl.BlockSpec((TM, F_pad), lambda i: (i, 0)),
                    # Weight & bias resident across all batch tiles.
                    pl.BlockSpec((F_pad, C_pad), lambda i: (0, 0),
                                 pipeline_mode=resident_mode),
                    pl.BlockSpec((1, C_pad), lambda i: (0, 0),
                                 pipeline_mode=resident_mode),
                ],
                out_specs=pl.BlockSpec((TM, C_pad), lambda i: (i, 0)),
            ),
            compiler_params=pltpu.CompilerParams(
                dimension_semantics=("parallel",),
                vmem_limit_bytes=vmem_limit,
            ),
        )(x_p, w_p, b_p)
    else:
        out_p = pl.pallas_call(
            _logreg_kernel_ktiled,
            out_shape=jax.ShapeDtypeStruct((B_pad, C_pad), seq.dtype),
            grid_spec=pltpu.PrefetchScalarGridSpec(
                num_scalar_prefetch=0,
                grid=(grid_m, grid_k),
                in_specs=[
                    pl.BlockSpec((TM, TK), lambda i, k: (i, k)),
                    pl.BlockSpec((TK, C_pad), lambda i, k: (k, 0)),
                    pl.BlockSpec((1, C_pad), lambda i, k: (0, 0)),
                ],
                out_specs=pl.BlockSpec((TM, C_pad), lambda i, k: (i, 0)),
                scratch_shapes=[pltpu.VMEM((TM, C_pad), jnp.float32)],
            ),
            compiler_params=pltpu.CompilerParams(
                dimension_semantics=("parallel", "arbitrary"),
                vmem_limit_bytes=vmem_limit,
            ),
        )(x_p, w_p, b_p)

    if B_pad != B or C_pad != C:
        return out_p[:B, :C]
    return out_p


def init_logreg_params(key, ft_in, nb_classes):
    """Deterministic params matching LogReg.__init__:
    xavier_uniform_ on weight (shape [nb_classes, ft_in]), zeros for bias."""
    bound = math.sqrt(6.0 / (ft_in + nb_classes))
    weight = jax.random.uniform(
        key, (nb_classes, ft_in), dtype=jnp.float32, minval=-bound, maxval=bound
    )
    bias = jnp.zeros((nb_classes,), dtype=jnp.float32)
    return weight, bias


if __name__ == "__main__":
    key = jax.random.PRNGKey(0)
    k_w, k_x, k_x2 = jax.random.split(key, 3)

    # Small example consistent with the module: batch=8, ft_in=32, classes=16.
    batch, ft_in, nb_classes = 8, 32, 16
    weight, bias = init_logreg_params(k_w, ft_in, nb_classes)
    seq = jax.random.normal(k_x, (batch, ft_in), dtype=jnp.float32)

    out = jax.block_until_ready(logreg_forward(seq, weight, bias))
    ref = seq @ weight.T + bias
    assert out.shape == (batch, nb_classes)
    assert jnp.allclose(out, ref, atol=1e-5, rtol=1e-5)

    # Unaligned shapes exercise the padding + multi-batch-tile path.
    b2, f2, c2 = 10, 48, 7
    w2, bias2 = init_logreg_params(k_w, f2, c2)
    seq2 = jax.random.normal(k_x2, (b2, f2), dtype=jnp.float32)
    out2 = jax.block_until_ready(logreg_forward(seq2, w2, bias2))
    ref2 = seq2 @ w2.T + bias2
    assert out2.shape == (b2, c2)
    assert jnp.allclose(out2, ref2, atol=1e-5, rtol=1e-5)

    print("KERNEL_OK")
</pallas_src>

<mosaic_0001>
module attributes {stable_mosaic.version = 11 : i64} {
  func.func @_logreg_kernel(%arg0: i32, %arg1: memref<8x128xf32, #tpu.memory_space<vmem>>, %arg2: memref<128x128xf32, #tpu.memory_space<vmem>>, %arg3: memref<1x128xf32, #tpu.memory_space<vmem>>, %arg4: memref<8x128xf32, #tpu.memory_space<vmem>>) attributes {dimension_semantics = [#tpu.dimension_semantics<parallel>], iteration_bounds = array<i64: 1>, scalar_prefetch = 0 : i64, scratch_operands = 0 : i64, tpu.core_type = #tpu.core_type<tc>, window_params = [{transform_indices = @transform_0, window_bounds = array<i64: 8, 128>}, {pipeline_mode = #tpu.pipeline_mode<synchronous>, transform_indices = @transform_1, window_bounds = array<i64: 128, 128>}, {pipeline_mode = #tpu.pipeline_mode<synchronous>, transform_indices = @transform_2, window_bounds = array<i64: 1, 128>}, {transform_indices = @transform_3, window_bounds = array<i64: 8, 128>}]} {
    %c0 = arith.constant 0 : index
    %c0_0 = arith.constant 0 : index
    %0 = vector.load %arg1[%c0, %c0_0] : memref<8x128xf32, #tpu.memory_space<vmem>>, vector<8x128xf32>
    %c0_1 = arith.constant 0 : index
    %c0_2 = arith.constant 0 : index
    %1 = vector.load %arg2[%c0_1, %c0_2] : memref<128x128xf32, #tpu.memory_space<vmem>>, vector<128x128xf32>
    %cst = arith.constant dense<0.000000e+00> : vector<8x128xf32>
    %2 = tpu.matmul %0, %1, %cst {dimension_numbers = #tpu.dot_dimension_numbers<[1], [0], [0], [1], [0, 0, 1, 1], [], []>} : vector<8x128xf32>, vector<128x128xf32>, vector<8x128xf32> -> vector<8x128xf32>
    %c0_3 = arith.constant 0 : index
    %c0_4 = arith.constant 0 : index
    %3 = vector.load %arg3[%c0_3, %c0_4] : memref<1x128xf32, #tpu.memory_space<vmem>>, vector<1x128xf32>
    %4 = vector.broadcast %3 : vector<1x128xf32> to vector<8x128xf32>
    %5 = arith.addf %2, %4 : vector<8x128xf32>
    %c0_5 = arith.constant 0 : index
    %c0_6 = arith.constant 0 : index
    %6 = vector.load %arg4[%c0_5, %c0_6] : memref<8x128xf32, #tpu.memory_space<vmem>>, vector<8x128xf32>
    tpu.vector_store %arg4[%c0_5, %c0_6], %5 {strides = array<i32>} : memref<8x128xf32, #tpu.memory_space<vmem>>, vector<8x128xf32>,
    return
  }
  func.func @transform_0(%arg0: i32) -> (i32, i32) {
    %c0_i32 = arith.constant 0 : i32
    %c0_i32_0 = arith.constant 0 : i32
    return %arg0, %c0_i32 : i32, i32
  }
  func.func @transform_1(%arg0: i32) -> (i32, i32) {
    %c0_i32 = arith.constant 0 : i32
    %c0_i32_0 = arith.constant 0 : i32
    %c0_i32_1 = arith.constant 0 : i32
    return %c0_i32, %c0_i32_0 : i32, i32
  }
  func.func @transform_2(%arg0: i32) -> (i32, i32) {
    %c0_i32 = arith.constant 0 : i32
    %c0_i32_0 = arith.constant 0 : i32
    %c0_i32_1 = arith.constant 0 : i32
    return %c0_i32, %c0_i32_0 : i32, i32
  }
  func.func @transform_3(%arg0: i32) -> (i32, i32) {
    %c0_i32 = arith.constant 0 : i32
    %c0_i32_0 = arith.constant 0 : i32
    return %arg0, %c0_i32 : i32, i32
  }
}

</mosaic_0001>

<llo_original>
// kernel: tpu_custom_call.1
$region0: #{tpu_custom_call.1}
  #allocation0 [shape = 'u32[]', space=smem, size = 0x4, offset = 0x4, fixed_abs, tag = 'smem constant byte address 0x4 - core index']
  #allocation1 [shape = 'u32[144,128]{1,0:T(1,128)}', space=vmem, size = 0x12000, scoped, tag = 'internal scratch']
  %s0 = inlined_call_operand.hbm [shape: f32[8,128], index: 0, kind: input, shape index: {}]
  %s1 = inlined_call_operand.hbm [shape: f32[128,128], index: 1, kind: input, shape index: {}]
  %s2 = inlined_call_operand.vmem [shape: f32[1,128], index: 2, kind: input, shape index: {}]
  %s3 = inlined_call_operand.hbm [shape: f32[8,128], index: 3, kind: output, shape index: {}]
  %s4 = sld [smem:[#allocation0]]
  $region30: #{tpu_custom_call.1} parent=0
    _
  %s6 = ssub.s32 1, %s4
  %s7 = scalar_select 0, %s6, %s4
  $region1: #{tpu_custom_call.1} parent=0
    #allocation2 [shape = 'u8[4096]{0}', space=vmem, size = 0x1000, scoped, tag = 'input window, operand 0, single buffered']
    #allocation3 [shape = 's32[1]{0}', space=sflag, size = 0x4, scoped, tag = 'scoped memory for tpu_custom_call.1']
    #allocation4 [shape = 's32[1]{0}', space=sflag, size = 0x4, scoped, tag = 'scoped memory for tpu_custom_call.1']
    #allocation5 [shape = 'u8[65536]{0}', space=vmem, size = 0x10000, scoped, tag = 'input window, operand 1, single buffered']
    #allocation6 [shape = 's32[1]{0}', space=sflag, size = 0x4, scoped, tag = 'scoped memory for tpu_custom_call.1']
    #allocation7 [shape = 'u8[4096]{0}', space=vmem, size = 0x1000, scoped, tag = 'output window, operand 0, single buffered']
    %8 = vsyncpa [#allocation3], 0
    %9 = vsyncpa [#allocation6], 0
    %10 = vsyncpa [#allocation4], 0
    // Predicated region
    $region2: #{tpu_custom_call.1} parent=1 // pred_check
      _
    $region3: #{tpu_custom_call.1} parent=1 // pred_check_branch
      %12 = sbr.rel (0) target = $region5
    $region4: #{tpu_custom_call.1} parent=1 // pred_region
      %s14 = ssub.s32 128, 128
      %15 = vsyncadd [#allocation3], %s14
      %s17 = sshll.u32 [#allocation2], 4
      %s18 = int_to_ptr.vmem [resolvable:$true] %s17
      %20 = dma.hbm_to_vmem [thread:$0]  %s0, 128, %s18, [#allocation3]
    $region5: #{tpu_custom_call.1} parent=1 // pred_fallthru
      _
    // Predicated region
    $region6: #{tpu_custom_call.1} parent=1 // pred_check
      _
    $region7: #{tpu_custom_call.1} parent=1 // pred_check_branch
      %22 = sbr.rel (0) target = $region9
    $region8: #{tpu_custom_call.1} parent=1 // pred_region
      %s24 = ssub.s32 2048, 2048
      %25 = vsyncadd [#allocation6], %s24
      %s26 = sshll.u32 [#allocation5], 4
      %s27 = int_to_ptr.vmem [resolvable:$true] %s26
      %32 = dma.hbm_to_vmem [thread:$0]  %s1, 2048, %s27, [#allocation6], 128, 128, 8
    $region9: #{tpu_custom_call.1} parent=1 // pred_fallthru
      _
    // Predicated region
    $region10: #{tpu_custom_call.1} parent=1 // pred_check
      _
    $region11: #{tpu_custom_call.1} parent=1 // pred_check_branch
      %34 = sbr.rel (0) target = $region13
    $region12: #{tpu_custom_call.1} parent=1 // pred_region
      _
    $region13: #{tpu_custom_call.1} parent=1 // pred_fallthru
      _
    // Predicated region
    $region14: #{tpu_custom_call.1} parent=1 // pred_check
      _
    $region15: #{tpu_custom_call.1} parent=1 // pred_check_branch
      %36 = sbr.rel (0) target = $region17
    $region16: #{tpu_custom_call.1} parent=1 // pred_region
      %37 = dma.done [#allocation3], 128
    $region17: #{tpu_custom_call.1} parent=1 // pred_fallthru
      _
    // Predicated region
    $region18: #{tpu_custom_call.1} parent=1 // pred_check
      _
    $region19: #{tpu_custom_call.1} parent=1 // pred_check_branch
      %39 = sbr.rel (0) target = $region21
    $region20: #{tpu_custom_call.1} parent=1 // pred_region
      %40 = dma.done [#allocation6], 2048
    $region21: #{tpu_custom_call.1} parent=1 // pred_fallthru
      _
    %v41 = vld [vmem:[#allocation2] sm:$0xff]
    %v42 = vld [vmem:[#allocation5] sm:$0xff]
    %v43 = vld [vmem:[#allocation5 + $0x8] sm:$0xff]
    %v44 = vld [vmem:[#allocation5 + $0x10] sm:$0xff]
    %v45 = vld [vmem:[#allocation5 + $0x18] sm:$0xff]
    %v46 = vld [vmem:[#allocation5 + $0x20] sm:$0xff]
    %v47 = vld [vmem:[#allocation5 + $0x28] sm:$0xff]
    %v48 = vld [vmem:[#allocation5 + $0x30] sm:$0xff]
    %v49 = vld [vmem:[#allocation5 + $0x38] sm:$0xff]
    %v50 = vld [vmem:[#allocation5 + $0x40] sm:$0xff]
    %v51 = vld [vmem:[#allocation5 + $0x48] sm:$0xff]
    %v52 = vld [vmem:[#allocation5 + $0x50] sm:$0xff]
    %v53 = vld [vmem:[#allocation5 + $0x58] sm:$0xff]
    %v54 = vld [vmem:[#allocation5 + $0x60] sm:$0xff]
    %v55 = vld [vmem:[#allocation5 + $0x68] sm:$0xff]
    %v56 = vld [vmem:[#allocation5 + $0x70] sm:$0xff]
    %v57 = vld [vmem:[#allocation5 + $0x78] sm:$0xff]
    %v58 = vld [vmem:[%s2] sm:$0x1]
    %v60 = vlaneseq
    %v61 = vshrl.u32 %v60, 7
    %v62 = vsub.s32 0, %v61
    %v63 = vrot.slane %v58, %v62
    %65 = vmatprep.subr.mxu0 0.0
    %66 = vmatpush1.msra.mxu0 %v42
    %67 = vmatprep.subr.mxu0 0.0
    %68 = vmatpush1.msra.mxu0 %v43
    %69 = vmatprep.subr.mxu0 0.0
    %70 = vmatpush1.msra.mxu0 %v44
    %71 = vmatprep.subr.mxu0 0.0
    %72 = vmatpush1.msra.mxu0 %v45
    %73 = vmatprep.subr.mxu0 0.0
    %74 = vmatpush1.msra.mxu0 %v46
    %75 = vmatprep.subr.mxu0 0.0
    %76 = vmatpush1.msra.mxu0 %v47
    %77 = vmatprep.subr.mxu0 0.0
    %78 = vmatpush1.msra.mxu0 %v48
    %79 = vmatprep.subr.mxu0 0.0
    %80 = vmatpush1.msra.mxu0 %v49
    %81 = vmatprep.subr.mxu0 0.0
    %82 = vmatpush1.msra.mxu0 %v50
    %83 = vmatprep.subr.mxu0 0.0
    %84 = vmatpush1.msra.mxu0 %v51
    %85 = vmatprep.subr.mxu0 0.0
    %86 = vmatpush1.msra.mxu0 %v52
    %87 = vmatprep.subr.mxu0 0.0
    %88 = vmatpush1.msra.mxu0 %v53
    %89 = vmatprep.subr.mxu0 0.0
    %90 = vmatpush1.msra.mxu0 %v54
    %91 = vmatprep.subr.mxu0 0.0
    %92 = vmatpush1.msra.mxu0 %v55
    %93 = vmatprep.subr.mxu0 0.0
    %94 = vmatpush1.msra.mxu0 %v56
    %95 = vmatprep.subr.mxu0 0.0
    %96 = vmatpush1.msra.mxu0 %v57
    %97 = vmatprep.subr.mxu0 0.0
    %98 = vmatpush1.msra.mxu0 0.0
    %99 = vmatprep.subr.mxu0 0.0
    %100 = vmatpush1.msra.mxu0 0.0
    %101 = vmatprep.subr.mxu0 0.0
    %102 = vmatpush1.msra.mxu0 0.0
    %103 = vmatprep.subr.mxu0 0.0
    %104 = vmatpush1.msra.mxu0 0.0
    %105 = vmatprep.subr.mxu0 0.0
    %106 = vmatpush1.msra.mxu0 0.0
    %107 = vmatprep.subr.mxu0 0.0
    %108 = vmatpush1.msra.mxu0 0.0
    %109 = vmatprep.subr.mxu0 0.0
    %110 = vmatpush1.msra.mxu0 0.0
    %111 = vmatprep.subr.mxu0 0.0
    %112 = vmatpush1.msra.mxu0 0.0
    %113 = vmatprep.subr.mxu0 0.0
    %114 = vmatpush1.msra.mxu0 0.0
    %115 = vmatprep.subr.mxu0 0.0
    %116 = vmatpush1.msra.mxu0 0.0
    %117 = vmatprep.subr.mxu0 0.0
    %118 = vmatpush1.msra.mxu0 0.0
    %119 = vmatprep.subr.mxu0 0.0
    %120 = vmatpush1.msra.mxu0 0.0
    %121 = vmatprep.subr.mxu0 0.0
    %122 = vmatpush1.msra.mxu0 0.0
    %123 = vmatprep.subr.mxu0 0.0
    %124 = vmatpush1.msra.mxu0 0.0
    %125 = vmatprep.subr.mxu0 0.0
    %126 = vmatpush1.msra.mxu0 0.0
    %127 = vmatprep.subr.mxu0 0.0
    %128 = vmatpush1.msra.mxu0 0.0
    %129 = vmatprep.mubr.f32.mxu0 0.0
    %130 = vmatmul.mubr.f32.gmra.mrb[0].mxu0 %v41
    %v131 = vpop.f32.mrb[0].mxu0
    %v132 = vadd.f32 %v63, %v131
    %v133 = vpop.f32.mrb[0].mxu0
    %134 = vdwg.mxu0
    %135 = vst [vmem:[#allocation7] sm:$0xff] %v132
    // Predicated region
    $region22: #{tpu_custom_call.1} parent=1 // pred_check
      _
    $region23: #{tpu_custom_call.1} parent=1 // pred_check_branch
      %137 = sbr.rel (0) target = $region25
    $region24: #{tpu_custom_call.1} parent=1 // pred_region
      %s139 = ssub.s32 128, 128
      %140 = vsyncadd [#allocation4], %s139
      %s142 = sshll.u32 [#allocation7], 4
      %s143 = int_to_ptr.vmem [resolvable:$true] %s142
      %145 = dma.vmem_to_hbm [thread:$0]  %s143, 128, %s3, [#allocation4]
    $region25: #{tpu_custom_call.1} parent=1 // pred_fallthru
      _
    // Predicated region
    $region26: #{tpu_custom_call.1} parent=1 // pred_check
      _
    $region27: #{tpu_custom_call.1} parent=1 // pred_check_branch
      %147 = sbr.rel (0) target = $region29
    $region28: #{tpu_custom_call.1} parent=1 // pred_region
      %148 = dma.done [#allocation4], 128
    $region29: #{tpu_custom_call.1} parent=1 // pred_fallthru
      _
    %149 = vsyncpa [#allocation3], 1
    %150 = vsyncpa [#allocation6], 1
    %151 = vsyncpa [#allocation4], 1

</llo_original>
